<compile_context>
chip_gen: v5e
topology: v5e:2x2
jax: 0.10.0
libtpu: 0.0.40
codegen_flags: <defaults>
</compile_context>

<pallas_src>
import functools

import jax
import jax.numpy as jnp
from jax.experimental import pallas as pl
from jax.experimental.pallas import tpu as pltpu


# ----------------------------------------------------------------------------
# helpers
# ----------------------------------------------------------------------------
def _row_tile(m, cap=256):
    """Largest row tile <= cap that divides m (m must be a multiple of 8)."""
    assert m % 8 == 0, "token count must be a multiple of 8"
    if m <= cap:
        return m
    t = cap - (cap % 8)
    while m % t:
        t -= 8
    return max(t, 8)


def _partials_to_pair(parts):
    """parts: [n_tiles, 8, 128] with lane0 = sum_a, lane1 = sum_b."""
    return jnp.sum(parts[:, 0, 0]), jnp.sum(parts[:, 0, 1])


# ----------------------------------------------------------------------------
# Kernel 1: fused selector  (embedding -> dense+GELU -> 2-class head -> CE+argmax)
# ----------------------------------------------------------------------------
def _selector_kernel(ids_ref, mask_ref, lbl_ref, embed_ref, w_enc_ref, b_enc_ref,
                     wsd_ref, bsd_ref, gen_ref, part_ref):
    ids = ids_ref[...]                                             # [tm, 1] int32
    tm = ids.shape[0]
    vsz = embed_ref.shape[0]

    # Embedding gather as a one-hot matmul (MXU friendly for small vocab).
    # TODO(synk): at real vocab sizes (50k) this needs a DMA gather / scalar
    #             prefetch path; the demo vocab fits VMEM so one-hot is used.
    one_hot = (jax.lax.broadcasted_iota(jnp.int32, (tm, vsz), 1) == ids)
    x = jnp.dot(one_hot.astype(jnp.bfloat16), embed_ref[...],
                preferred_element_type=jnp.float32)                # [tm, H] f32

    # Encoder dense + GELU (bf16 MXU inputs, f32 accumulate / epilogue).
    # NOTE: tanh-approx GELU (HF Longformer uses exact erf GELU; kept approx
    # for Mosaic-friendly lowering, small numeric drift).
    h = jnp.dot(x.astype(jnp.bfloat16), w_enc_ref[...],
                preferred_element_type=jnp.float32) + b_enc_ref[...]
    h = jax.nn.gelu(h, approximate=True)                           # [tm, H]

    # 2-class selector head as a single score d = logit1 - logit0 (lane dense:
    # no [tm, 2] matmul, no 2-wide stores).
    d = jnp.sum(h * wsd_ref[...].astype(jnp.float32), axis=-1, keepdims=True)
    d = d + bsd_ref[...]                                           # [tm, 1]

    # Token-classification cross entropy with ignore_index = -100:
    #   CE = softplus((1 - 2y) * d)   (identical to lse([l0,l1]) - l_y)
    labels = lbl_ref[...]                                          # [tm, 1]
    valid = labels >= 0
    y = jnp.where(valid, labels, 0).astype(jnp.float32)
    z = (1.0 - 2.0 * y) * d
    nll = jnp.maximum(z, 0.0) + jnp.log(1.0 + jnp.exp(-jnp.abs(z)))
    nll = nll * valid.astype(jnp.float32)

    # argmax over 2 classes == "class-1 logit strictly greater" == d > 0,
    # combined with the attention mask ("decode" replaced by masked ids).
    keep = (d > 0.0) & (mask_ref[...] == 1)
    gen_ref[...] = jnp.where(keep, ids, 0)

    nll_sum = jnp.sum(nll, keepdims=True).reshape(1, 1, 1)
    cnt = jnp.sum(valid.astype(jnp.float32), keepdims=True).reshape(1, 1, 1)
    lane = jax.lax.broadcasted_iota(jnp.int32, (1, 8, 128), 2)
    part_ref[...] = jnp.where(lane == 0, nll_sum,
                              jnp.where(lane == 1, cnt, 0.0))


# ----------------------------------------------------------------------------
# Kernel 2: encoder of generated ids + fused grammar mean-pool / softmax head
# ----------------------------------------------------------------------------
def _encode_pool_kernel(ids_ref, embed_ref, w_enc_ref, b_enc_ref, wgd_ref,
                        bgd_ref, h_ref, part_ref, *, seq_len):
    ids = ids_ref[...]                                             # [rows, 1]
    rows = ids.shape[0]
    tb = rows // seq_len
    vsz = embed_ref.shape[0]

    one_hot = (jax.lax.broadcasted_iota(jnp.int32, (rows, vsz), 1) == ids)
    x = jnp.dot(one_hot.astype(jnp.bfloat16), embed_ref[...],
                preferred_element_type=jnp.float32)
    h = jnp.dot(x.astype(jnp.bfloat16), w_enc_ref[...],
                preferred_element_type=jnp.float32) + b_enc_ref[...]
    h = jax.nn.gelu(h, approximate=True)                           # [rows, H] f32
    h_ref[...] = h.astype(h_ref.dtype)                             # bf16 out (reused by LM head)

    # Grammar head fused into the epilogue: mean-pool per sequence, then the
    # 2-class softmax via the logit difference (p1 = sigmoid(d), p0 = sigmoid(-d)).
    wgd = wgd_ref[...].astype(jnp.float32)                         # [1, H]
    p0_sum = jnp.zeros((1, 1), jnp.float32)
    p1_sum = jnp.zeros((1, 1), jnp.float32)
    for t in range(tb):                                            # static unroll
        pooled = jnp.mean(h[t * seq_len:(t + 1) * seq_len, :], axis=0,
                          keepdims=True)                           # [1, H]
        dg = jnp.sum(pooled * wgd, axis=-1, keepdims=True) + bgd_ref[...]
        p1_sum = p1_sum + 1.0 / (1.0 + jnp.exp(-dg))
        p0_sum = p0_sum + 1.0 / (1.0 + jnp.exp(dg))

    lane = jax.lax.broadcasted_iota(jnp.int32, (1, 8, 128), 2)
    part_ref[...] = jnp.where(lane == 0, p0_sum.reshape(1, 1, 1),
                              jnp.where(lane == 1, p1_sum.reshape(1, 1, 1), 0.0))


# ----------------------------------------------------------------------------
# Kernel 3: streaming LM-head cross entropy (online logsumexp over vocab tiles)
# ----------------------------------------------------------------------------
def _lm_ce_kernel(h_ref, w_ref, b_ref, lbl_ref, part_ref, m_sc, l_sc, p_sc):
    j = pl.program_id(1)

    @pl.when(j == 0)
    def _():
        m_sc[...] = jnp.full_like(m_sc, -jnp.inf)
        l_sc[...] = jnp.zeros_like(l_sc)
        p_sc[...] = jnp.zeros_like(p_sc)

    logits = jnp.dot(h_ref[...], w_ref[...],
                     preferred_element_type=jnp.float32) + b_ref[...]  # [tm, tv]
    tv = logits.shape[1]
    labels = lbl_ref[...]                                              # [tm, 1]

    # per-tile "picked logit": compare labels only against this vocab tile.
    lbl_loc = labels - j * tv
    in_tile = (lbl_loc >= 0) & (lbl_loc < tv)
    voc = jax.lax.broadcasted_iota(jnp.int32, logits.shape, 1)
    p_sc[...] += jnp.sum(jnp.where((voc == lbl_loc) & in_tile, logits, 0.0),
                         axis=-1, keepdims=True)

    # online logsumexp update.
    tile_max = jnp.max(logits, axis=-1, keepdims=True)
    m_new = jnp.maximum(m_sc[...], tile_max)
    l_sc[...] = l_sc[...] * jnp.exp(m_sc[...] - m_new) + \
        jnp.sum(jnp.exp(logits - m_new), axis=-1, keepdims=True)
    m_sc[...] = m_new

    @pl.when(j == pl.num_programs(1) - 1)
    def _():
        valid = (labels >= 0).astype(jnp.float32)
        lse = m_sc[...] + jnp.log(l_sc[...])
        nll = (lse - p_sc[...]) * valid
        nll_sum = jnp.sum(nll, keepdims=True).reshape(1, 1, 1)
        cnt = jnp.sum(valid, keepdims=True).reshape(1, 1, 1)
        lane = jax.lax.broadcasted_iota(jnp.int32, (1, 8, 128), 2)
        part_ref[...] = jnp.where(lane == 0, nll_sum,
                                  jnp.where(lane == 1, cnt, 0.0))


# ----------------------------------------------------------------------------
# MAPLEv2 (Pallas) wrapper
# ----------------------------------------------------------------------------
class MAPLEv2Output:
    def __init__(self, **kwargs):
        for key, value in kwargs.items():
            setattr(self, key, value)


class MAPLEv2Pallas:
    """Numeric skeleton of MAPLEv2.forward (selector_type='v2', GPT + grammar on)."""

    def __init__(self, vocab=256, hidden=128, num_labels=2, seed=0):
        assert num_labels == 2, "2-class heads use the logit-difference form"
        self.vocab, self.hidden, self.num_labels = vocab, hidden, num_labels
        k = jax.random.PRNGKey(seed)
        ks = jax.random.split(k, 8)
        s = 0.02
        embed = jax.random.normal(ks[0], (vocab, hidden), jnp.float32) * s
        w_enc = jax.random.normal(ks[1], (hidden, hidden), jnp.float32) * s
        b_enc = jnp.zeros((hidden,), jnp.float32)
        w_sel = jax.random.normal(ks[2], (hidden, num_labels), jnp.float32) * s
        b_sel = jnp.zeros((num_labels,), jnp.float32)
        w_lm = jax.random.normal(ks[3], (hidden, vocab), jnp.float32) * s
        b_lm = jnp.zeros((vocab,), jnp.float32)
        w_gram = jax.random.normal(ks[4], (hidden, 2), jnp.float32) * s
        b_gram = jnp.zeros((2,), jnp.float32)

        # bf16 MXU operands, pre-cast ONCE (f32 biases / epilogues stay f32).
        self.embed = embed.astype(jnp.bfloat16)                     # [V, H]
        self.w_enc = w_enc.astype(jnp.bfloat16)                     # [H, H]
        self.b_enc = b_enc.reshape(1, hidden)                       # [1, H] f32
        # 2-class heads stored as logit-difference vectors (lane-dense).
        self.w_sel_diff = (w_sel[:, 1] - w_sel[:, 0]).reshape(1, hidden).astype(jnp.bfloat16)
        self.b_sel_diff = (b_sel[1] - b_sel[0]).reshape(1, 1).astype(jnp.float32)
        self.w_gram_diff = (w_gram[:, 1] - w_gram[:, 0]).reshape(1, hidden).astype(jnp.bfloat16)
        self.b_gram_diff = (b_gram[1] - b_gram[0]).reshape(1, 1).astype(jnp.float32)
        # GPT LM head (frozen).
        self.w_lm = w_lm.astype(jnp.bfloat16)                       # [H, V]
        self.b_lm = b_lm.reshape(1, vocab)                          # [1, V] f32

    # --- stage 1: fused selector ------------------------------------------
    def _selector_call(self, input_ids, attention_mask, labels):
        B, S = input_ids.shape
        M, H, V = B * S, self.hidden, self.vocab
        tm = _row_tile(M)
        nm = M // tm
        ids = input_ids.reshape(M, 1).astype(jnp.int32)
        msk = attention_mask.reshape(M, 1).astype(jnp.int32)
        lbl = labels.reshape(M, 1).astype(jnp.int32)

        gen, parts = pl.pallas_call(
            _selector_kernel,
            out_shape=(jax.ShapeDtypeStruct((M, 1), jnp.int32),
                       jax.ShapeDtypeStruct((nm, 8, 128), jnp.float32)),
            grid=(nm,),
            in_specs=[
                pl.BlockSpec((tm, 1), lambda i: (i, 0)),
                pl.BlockSpec((tm, 1), lambda i: (i, 0)),
                pl.BlockSpec((tm, 1), lambda i: (i, 0)),
                pl.BlockSpec((V, H), lambda i: (0, 0)),
                pl.BlockSpec((H, H), lambda i: (0, 0)),
                pl.BlockSpec((1, H), lambda i: (0, 0)),
                pl.BlockSpec((1, H), lambda i: (0, 0)),
                pl.BlockSpec((1, 1), lambda i: (0, 0)),
            ],
            out_specs=(
                pl.BlockSpec((tm, 1), lambda i: (i, 0)),
                pl.BlockSpec((1, 8, 128), lambda i: (i, 0, 0)),
            ),
            compiler_params=pltpu.CompilerParams(
                dimension_semantics=("parallel",)),
        )(ids, msk, lbl, self.embed, self.w_enc, self.b_enc,
          self.w_sel_diff, self.b_sel_diff)

        nll_sum, cnt = _partials_to_pair(parts)
        loss_s = nll_sum / jnp.maximum(cnt, 1.0)
        return loss_s, gen.reshape(B, S)

    # --- stage 2: encoder of generated ids + grammar head ------------------
    def _encode_pool_call(self, generated_ids):
        B, S = generated_ids.shape
        M, H, V = B * S, self.hidden, self.vocab
        tb = B
        while tb > 1 and (tb * S > 512 or B % tb != 0):
            tb -= 1
        rows = tb * S
        assert rows % 8 == 0 and M % rows == 0
        nb = M // rows
        ids = generated_ids.reshape(M, 1).astype(jnp.int32)

        kernel = functools.partial(_encode_pool_kernel, seq_len=S)
        h2, parts = pl.pallas_call(
            kernel,
            out_shape=(jax.ShapeDtypeStruct((M, H), jnp.bfloat16),
                       jax.ShapeDtypeStruct((nb, 8, 128), jnp.float32)),
            grid=(nb,),
            in_specs=[
                pl.BlockSpec((rows, 1), lambda i: (i, 0)),
                pl.BlockSpec((V, H), lambda i: (0, 0)),
                pl.BlockSpec((H, H), lambda i: (0, 0)),
                pl.BlockSpec((1, H), lambda i: (0, 0)),
                pl.BlockSpec((1, H), lambda i: (0, 0)),
                pl.BlockSpec((1, 1), lambda i: (0, 0)),
            ],
            out_specs=(
                pl.BlockSpec((rows, H), lambda i: (i, 0)),
                pl.BlockSpec((1, 8, 128), lambda i: (i, 0, 0)),
            ),
            compiler_params=pltpu.CompilerParams(
                dimension_semantics=("parallel",)),
        )(ids, self.embed, self.w_enc, self.b_enc,
          self.w_gram_diff, self.b_gram_diff)

        p0_sum, p1_sum = _partials_to_pair(parts)
        loss_g = p0_sum / B + 1.0 / (p1_sum / B + 1e-5)
        return h2, loss_g

    # --- stage 3: streaming LM-head CE --------------------------------------
    def _lm_ce_call(self, h2, labels_shift):
        M, H = h2.shape
        V = self.vocab
        tm = _row_tile(M)
        tv = V if V <= 2048 else 2048       # sized for 64 MiB VMEM (v7x-safe)
        assert V % tv == 0
        nm, nv = M // tm, V // tv

        parts = pl.pallas_call(
            _lm_ce_kernel,
            out_shape=jax.ShapeDtypeStruct((nm, 8, 128), jnp.float32),
            grid=(nm, nv),
            in_specs=[
                pl.BlockSpec((tm, H), lambda i, j: (i, 0)),
                pl.BlockSpec((H, tv), lambda i, j: (0, j)),
                pl.BlockSpec((1, tv), lambda i, j: (0, j)),
                pl.BlockSpec((tm, 1), lambda i, j: (i, 0)),
            ],
            out_specs=pl.BlockSpec((1, 8, 128), lambda i, j: (i, 0, 0)),
            scratch_shapes=[pltpu.VMEM((tm, 1), jnp.float32)] * 3,
            compiler_params=pltpu.CompilerParams(
                dimension_semantics=("parallel", "arbitrary"),
                vmem_limit_bytes=64 * 1024 * 1024),
        )(h2, self.w_lm, self.b_lm, labels_shift)

        nll_sum, cnt = _partials_to_pair(parts)
        ce = nll_sum / jnp.maximum(cnt, 1.0)
        return jnp.exp(ce)                                           # perplexity

    # --- full forward --------------------------------------------------------
    def forward(self, input_ids, attention_mask, labels):
        B, S = input_ids.shape
        loss_s, generated_ids = self._selector_call(input_ids, attention_mask, labels)
        # encode(generated_ids) is computed ONCE and shared by GPT + grammar paths.
        h2, loss_g = self._encode_pool_call(generated_ids)
        # GPT-2 shifted CE (logits[:, :-1] vs labels[:, 1:]) expressed by marking
        # the last position of each sequence with ignore_index -100.
        labels_shift = jnp.concatenate(
            [generated_ids[:, 1:], jnp.full((B, 1), -100, jnp.int32)], axis=1)
        loss_ppl = self._lm_ce_call(h2, labels_shift.reshape(B * S, 1))
        return MAPLEv2Output(loss_s=loss_s, generated_sequences=generated_ids,
                             loss_ppl=loss_ppl, loss_g=loss_g)


# ----------------------------------------------------------------------------
if __name__ == "__main__":
    B, S = 2, 8
    model = MAPLEv2Pallas(vocab=256, hidden=128, num_labels=2, seed=0)

    key = jax.random.PRNGKey(0)
    k_ids, _ = jax.random.split(key)
    input_ids = jax.random.randint(k_ids, (B, S), 1, 256, dtype=jnp.int32)
    attention_mask = jnp.ones((B, S), jnp.int32)
    # deterministic synthetic token labels (ContextSelector supervision proxy),
    # -100 where padded.
    labels = jnp.where(attention_mask == 1, input_ids % 2, -100).astype(jnp.int32)

    out = model.forward(input_ids, attention_mask, labels)
    jax.block_until_ready((out.loss_s, out.loss_ppl, out.loss_g,
                           out.generated_sequences))
    print("KERNEL_OK")
</pallas_src>

<mosaic_0001>
module attributes {stable_mosaic.version = 11 : i64} {
  func.func @_selector_kernel(%arg0: i32, %arg1: memref<16x1xi32, #tpu.memory_space<vmem>>, %arg2: memref<16x1xi32, #tpu.memory_space<vmem>>, %arg3: memref<16x1xi32, #tpu.memory_space<vmem>>, %arg4: memref<256x128xbf16, #tpu.memory_space<vmem>>, %arg5: memref<128x128xbf16, #tpu.memory_space<vmem>>, %arg6: memref<1x128xf32, #tpu.memory_space<vmem>>, %arg7: memref<1x128xbf16, #tpu.memory_space<vmem>>, %arg8: memref<1x1xf32, #tpu.memory_space<vmem>>, %arg9: memref<16x1xi32, #tpu.memory_space<vmem>>, %arg10: memref<1x8x128xf32, #tpu.memory_space<vmem>>) attributes {dimension_semantics = [#tpu.dimension_semantics<parallel>], iteration_bounds = array<i64: 1>, scalar_prefetch = 0 : i64, scratch_operands = 0 : i64, tpu.core_type = #tpu.core_type<tc>, window_params = [{transform_indices = @transform_0, window_bounds = array<i64: 16, 1>}, {transform_indices = @transform_1, window_bounds = array<i64: 16, 1>}, {transform_indices = @transform_2, window_bounds = array<i64: 16, 1>}, {pipeline_mode = #tpu.pipeline_mode<synchronous>, transform_indices = @transform_3, window_bounds = array<i64: 256, 128>}, {pipeline_mode = #tpu.pipeline_mode<synchronous>, transform_indices = @transform_4, window_bounds = array<i64: 128, 128>}, {pipeline_mode = #tpu.pipeline_mode<synchronous>, transform_indices = @transform_5, window_bounds = array<i64: 1, 128>}, {pipeline_mode = #tpu.pipeline_mode<synchronous>, transform_indices = @transform_6, window_bounds = array<i64: 1, 128>}, {pipeline_mode = #tpu.pipeline_mode<synchronous>, transform_indices = @transform_7, window_bounds = array<i64: 1, 1>}, {transform_indices = @transform_8, window_bounds = array<i64: 16, 1>}, {transform_indices = @transform_9, window_bounds = array<i64: 1, 8, 128>}]} {
    %c0 = arith.constant 0 : index
    %c0_0 = arith.constant 0 : index
    %0 = vector.load %arg1[%c0, %c0_0] : memref<16x1xi32, #tpu.memory_space<vmem>>, vector<16x1xi32>
    %1 = tpu.iota {dimensions = array<i32: 1>} : vector<16x256xi32>
    %2 = vector.broadcast %0 : vector<16x1xi32> to vector<16x256xi32>
    %3 = arith.cmpi eq, %1, %2 : vector<16x256xi32>
    %4 = arith.extui %3 : vector<16x256xi1> to vector<16x256xi32>
    %5 = arith.sitofp %4 : vector<16x256xi32> to vector<16x256xf32>
    %6 = arith.truncf %5 : vector<16x256xf32> to vector<16x256xbf16>
    %c0_1 = arith.constant 0 : index
    %c0_2 = arith.constant 0 : index
    %7 = vector.load %arg4[%c0_1, %c0_2] : memref<256x128xbf16, #tpu.memory_space<vmem>>, vector<256x128xbf16>
    %cst = arith.constant dense<0.000000e+00> : vector<16x128xf32>
    %8 = tpu.matmul %6, %7, %cst {dimension_numbers = #tpu.dot_dimension_numbers<[1], [0], [0], [1], [0, 0, 1, 1], [], []>} : vector<16x256xbf16>, vector<256x128xbf16>, vector<16x128xf32> -> vector<16x128xf32>
    %9 = arith.truncf %8 : vector<16x128xf32> to vector<16x128xbf16>
    %c0_3 = arith.constant 0 : index
    %c0_4 = arith.constant 0 : index
    %10 = vector.load %arg5[%c0_3, %c0_4] : memref<128x128xbf16, #tpu.memory_space<vmem>>, vector<128x128xbf16>
    %cst_5 = arith.constant dense<0.000000e+00> : vector<16x128xf32>
    %11 = tpu.matmul %9, %10, %cst_5 {dimension_numbers = #tpu.dot_dimension_numbers<[1], [0], [0], [1], [0, 0, 1, 1], [], []>} : vector<16x128xbf16>, vector<128x128xbf16>, vector<16x128xf32> -> vector<16x128xf32>
    %c0_6 = arith.constant 0 : index
    %c0_7 = arith.constant 0 : index
    %12 = vector.load %arg6[%c0_6, %c0_7] : memref<1x128xf32, #tpu.memory_space<vmem>>, vector<1x128xf32>
    %13 = vector.broadcast %12 : vector<1x128xf32> to vector<16x128xf32>
    %14 = arith.addf %11, %13 : vector<16x128xf32>
    %15 = arith.mulf %14, %14 : vector<16x128xf32>
    %16 = arith.mulf %14, %15 : vector<16x128xf32>
    %cst_8 = arith.constant 4.471500e-02 : f32
    %17 = vector.broadcast %cst_8 : f32 to vector<16x128xf32>
    %18 = arith.mulf %17, %16 : vector<16x128xf32>
    %19 = arith.addf %14, %18 : vector<16x128xf32>
    %cst_9 = arith.constant 0.797884583 : f32
    %20 = vector.broadcast %cst_9 : f32 to vector<16x128xf32>
    %21 = arith.mulf %20, %19 : vector<16x128xf32>
    %22 = math.tanh %21 : vector<16x128xf32>
    %cst_10 = arith.constant 1.000000e+00 : f32
    %23 = vector.broadcast %cst_10 : f32 to vector<16x128xf32>
    %24 = arith.addf %23, %22 : vector<16x128xf32>
    %cst_11 = arith.constant 5.000000e-01 : f32
    %25 = vector.broadcast %cst_11 : f32 to vector<16x128xf32>
    %26 = arith.mulf %25, %24 : vector<16x128xf32>
    %27 = arith.mulf %14, %26 : vector<16x128xf32>
    %c0_12 = arith.constant 0 : index
    %c0_13 = arith.constant 0 : index
    %28 = vector.load %arg7[%c0_12, %c0_13] : memref<1x128xbf16, #tpu.memory_space<vmem>>, vector<1x128xbf16>
    %29 = arith.extf %28 : vector<1x128xbf16> to vector<1x128xf32>
    %30 = vector.broadcast %29 : vector<1x128xf32> to vector<16x128xf32>
    %31 = arith.mulf %27, %30 : vector<16x128xf32>
    %cst_14 = arith.constant dense<0.000000e+00> : vector<16xf32>
    %32 = vector.multi_reduction <add>, %31, %cst_14 [1] : vector<16x128xf32> to vector<16xf32>
    %33 = vector.shape_cast %32 : vector<16xf32> to vector<16x1xf32>
    %c0_15 = arith.constant 0 : index
    %c0_16 = arith.constant 0 : index
    %34 = vector.load %arg8[%c0_15, %c0_16] : memref<1x1xf32, #tpu.memory_space<vmem>>, vector<1x1xf32>
    %35 = vector.broadcast %34 : vector<1x1xf32> to vector<16x1xf32>
    %36 = arith.addf %33, %35 : vector<16x1xf32>
    %c0_17 = arith.constant 0 : index
    %c0_18 = arith.constant 0 : index
    %37 = vector.load %arg3[%c0_17, %c0_18] : memref<16x1xi32, #tpu.memory_space<vmem>>, vector<16x1xi32>
    %c0_i32 = arith.constant 0 : i32
    %38 = vector.broadcast %c0_i32 : i32 to vector<16x1xi32>
    %39 = arith.cmpi sge, %37, %38 : vector<16x1xi32>
    %c0_i32_19 = arith.constant 0 : i32
    %40 = vector.broadcast %c0_i32_19 : i32 to vector<16x1xi32>
    %41 = arith.select %39, %37, %40 : vector<16x1xi1>, vector<16x1xi32>
    %42 = arith.sitofp %41 : vector<16x1xi32> to vector<16x1xf32>
    %cst_20 = arith.constant 2.000000e+00 : f32
    %43 = vector.broadcast %cst_20 : f32 to vector<16x1xf32>
    %44 = arith.mulf %43, %42 : vector<16x1xf32>
    %cst_21 = arith.constant 1.000000e+00 : f32
    %45 = vector.broadcast %cst_21 : f32 to vector<16x1xf32>
    %46 = arith.subf %45, %44 : vector<16x1xf32>
    %47 = arith.mulf %46, %36 : vector<16x1xf32>
    %cst_22 = arith.constant 0.000000e+00 : f32
    %48 = vector.broadcast %cst_22 : f32 to vector<16x1xf32>
    %49 = arith.maximumf %47, %48 : vector<16x1xf32>
    %50 = math.absf %47 : vector<16x1xf32>
    %cst_23 = arith.constant 0.000000e+00 : f32
    %51 = vector.broadcast %cst_23 : f32 to vector<16x1xf32>
    %52 = arith.subf %51, %50 : vector<16x1xf32>
    %53 = math.exp %52 : vector<16x1xf32>
    %cst_24 = arith.constant 1.000000e+00 : f32
    %54 = vector.broadcast %cst_24 : f32 to vector<16x1xf32>
    %55 = arith.addf %54, %53 : vector<16x1xf32>
    %56 = math.log %55 : vector<16x1xf32>
    %57 = arith.addf %49, %56 : vector<16x1xf32>
    %58 = arith.extui %39 : vector<16x1xi1> to vector<16x1xi32>
    %59 = arith.sitofp %58 : vector<16x1xi32> to vector<16x1xf32>
    %60 = arith.mulf %57, %59 : vector<16x1xf32>
    %cst_25 = arith.constant 0.000000e+00 : f32
    %61 = vector.broadcast %cst_25 : f32 to vector<16x1xf32>
    %62 = arith.cmpf ogt, %36, %61 : vector<16x1xf32>
    %c0_26 = arith.constant 0 : index
    %c0_27 = arith.constant 0 : index
    %63 = vector.load %arg2[%c0_26, %c0_27] : memref<16x1xi32, #tpu.memory_space<vmem>>, vector<16x1xi32>
    %c1_i32 = arith.constant 1 : i32
    %64 = vector.broadcast %c1_i32 : i32 to vector<16x1xi32>
    %65 = arith.cmpi eq, %63, %64 : vector<16x1xi32>
    %66 = arith.andi %62, %65 : vector<16x1xi1>
    %c0_i32_28 = arith.constant 0 : i32
    %67 = vector.broadcast %c0_i32_28 : i32 to vector<16x1xi32>
    %68 = arith.select %66, %0, %67 : vector<16x1xi1>, vector<16x1xi32>
    %c0_29 = arith.constant 0 : index
    %c0_30 = arith.constant 0 : index
    %69 = vector.load %arg9[%c0_29, %c0_30] : memref<16x1xi32, #tpu.memory_space<vmem>>, vector<16x1xi32>
    tpu.vector_store %arg9[%c0_29, %c0_30], %68 {strides = array<i32>} : memref<16x1xi32, #tpu.memory_space<vmem>>, vector<16x1xi32>,
    %70 = vector.shape_cast %60 : vector<16x1xf32> to vector<1x16x1xf32>
    %cst_31 = arith.constant dense<0.000000e+00> : vector<1xf32>
    %71 = vector.multi_reduction <add>, %70, %cst_31 [1, 2] : vector<1x16x1xf32> to vector<1xf32>
    %72 = vector.shape_cast %71 : vector<1xf32> to vector<1x1x1xf32>
    %73 = vector.extract %72[0, 0, 0] : f32 from vector<1x1x1xf32>
    %74 = vector.broadcast %73 : f32 to vector<1x1xf32>
    %75 = vector.shape_cast %74 : vector<1x1xf32> to vector<1x1x1xf32>
    %76 = arith.extui %39 : vector<16x1xi1> to vector<16x1xi32>
    %77 = arith.sitofp %76 : vector<16x1xi32> to vector<16x1xf32>
    %78 = vector.shape_cast %77 : vector<16x1xf32> to vector<1x16x1xf32>
    %cst_32 = arith.constant dense<0.000000e+00> : vector<1xf32>
    %79 = vector.multi_reduction <add>, %78, %cst_32 [1, 2] : vector<1x16x1xf32> to vector<1xf32>
    %80 = vector.shape_cast %79 : vector<1xf32> to vector<1x1x1xf32>
    %81 = vector.extract %80[0, 0, 0] : f32 from vector<1x1x1xf32>
    %82 = vector.broadcast %81 : f32 to vector<1x1xf32>
    %83 = vector.shape_cast %82 : vector<1x1xf32> to vector<1x1x1xf32>
    %84 = tpu.iota {dimensions = array<i32: 2>} : vector<1x8x128xi32>
    %c0_i32_33 = arith.constant 0 : i32
    %85 = vector.broadcast %c0_i32_33 : i32 to vector<1x8x128xi32>
    %86 = arith.cmpi eq, %84, %85 : vector<1x8x128xi32>
    %c1_i32_34 = arith.constant 1 : i32
    %87 = vector.broadcast %c1_i32_34 : i32 to vector<1x8x128xi32>
    %88 = arith.cmpi eq, %84, %87 : vector<1x8x128xi32>
    %cst_35 = arith.constant 0.000000e+00 : f32
    %89 = vector.shape_cast %83 : vector<1x1x1xf32> to vector<1x1x1xf32>
    %90 = vector.broadcast %89 : vector<1x1x1xf32> to vector<1x8x128xf32>
    %91 = vector.broadcast %cst_35 : f32 to vector<1x8x128xf32>
    %92 = arith.select %88, %90, %91 : vector<1x8x128xi1>, vector<1x8x128xf32>
    %93 = vector.shape_cast %75 : vector<1x1x1xf32> to vector<1x1x1xf32>
    %94 = vector.broadcast %93 : vector<1x1x1xf32> to vector<1x8x128xf32>
    %95 = arith.select %86, %94, %92 : vector<1x8x128xi1>, vector<1x8x128xf32>
    %c0_36 = arith.constant 0 : index
    %c0_37 = arith.constant 0 : index
    %c0_38 = arith.constant 0 : index
    %96 = vector.load %arg10[%c0_36, %c0_37, %c0_38] : memref<1x8x128xf32, #tpu.memory_space<vmem>>, vector<1x8x128xf32>
    tpu.vector_store %arg10[%c0_36, %c0_37, %c0_38], %95 {strides = array<i32>} : memref<1x8x128xf32, #tpu.memory_space<vmem>>, vector<1x8x128xf32>,
    return
  }
  func.func @transform_0(%arg0: i32) -> (i32, i32) {
    %c0_i32 = arith.constant 0 : i32
    %c0_i32_0 = arith.constant 0 : i32
    return %arg0, %c0_i32 : i32, i32
  }
  func.func @transform_1(%arg0: i32) -> (i32, i32) {
    %c0_i32 = arith.constant 0 : i32
    %c0_i32_0 = arith.constant 0 : i32
    return %arg0, %c0_i32 : i32, i32
  }
  func.func @transform_2(%arg0: i32) -> (i32, i32) {
    %c0_i32 = arith.constant 0 : i32
    %c0_i32_0 = arith.constant 0 : i32
    return %arg0, %c0_i32 : i32, i32
  }
  func.func @transform_3(%arg0: i32) -> (i32, i32) {
    %c0_i32 = arith.constant 0 : i32
    %c0_i32_0 = arith.constant 0 : i32
    %c0_i32_1 = arith.constant 0 : i32
    return %c0_i32, %c0_i32_0 : i32, i32
  }
  func.func @transform_4(%arg0: i32) -> (i32, i32) {
    %c0_i32 = arith.constant 0 : i32
    %c0_i32_0 = arith.constant 0 : i32
    %c0_i32_1 = arith.constant 0 : i32
    return %c0_i32, %c0_i32_0 : i32, i32
  }
  func.func @transform_5(%arg0: i32) -> (i32, i32) {
    %c0_i32 = arith.constant 0 : i32
    %c0_i32_0 = arith.constant 0 : i32
    %c0_i32_1 = arith.constant 0 : i32
    return %c0_i32, %c0_i32_0 : i32, i32
  }
  func.func @transform_6(%arg0: i32) -> (i32, i32) {
    %c0_i32 = arith.constant 0 : i32
    %c0_i32_0 = arith.constant 0 : i32
    %c0_i32_1 = arith.constant 0 : i32
    return %c0_i32, %c0_i32_0 : i32, i32
  }
  func.func @transform_7(%arg0: i32) -> (i32, i32) {
    %c0_i32 = arith.constant 0 : i32
    %c0_i32_0 = arith.constant 0 : i32
    %c0_i32_1 = arith.constant 0 : i32
    return %c0_i32, %c0_i32_0 : i32, i32
  }
  func.func @transform_8(%arg0: i32) -> (i32, i32) {
    %c0_i32 = arith.constant 0 : i32
    %c0_i32_0 = arith.constant 0 : i32
    return %arg0, %c0_i32 : i32, i32
  }
  func.func @transform_9(%arg0: i32) -> (i32, i32, i32) {
    %c0_i32 = arith.constant 0 : i32
    %c0_i32_0 = arith.constant 0 : i32
    %c0_i32_1 = arith.constant 0 : i32
    return %arg0, %c0_i32, %c0_i32_0 : i32, i32, i32
  }
}

</mosaic_0001>

<llo_original>
// kernel: tpu_custom_call.1
$region0: #{tpu_custom_call.1}
  #allocation0 [shape = 'u32[]', space=smem, size = 0x4, offset = 0x4, fixed_abs, tag = 'smem constant byte address 0x4 - core index']
  #allocation1 [shape = 'u32[72,128]{1,0:T(1,128)}', space=vmem, size = 0x9000, scoped, tag = 'internal scratch']
  #allocation2 [shape = 'f32[1,1]{1,0:T(1,128)S(1)}', space=vmem, size = 0x200, scoped, tag = 'scoped memory for tpu_custom_call.1']
  %s0 = inlined_call_operand.vmem [shape: s32[16,1], index: 0, kind: input, shape index: {}]
  %s1 = inlined_call_operand.vmem [shape: s32[16,1], index: 1, kind: input, shape index: {}]
  %s2 = inlined_call_operand.vmem [shape: s32[16,1], index: 2, kind: input, shape index: {}]
  %s3 = inlined_call_operand.hbm [shape: bf16[256,128], index: 3, kind: input, shape index: {}]
  %s4 = inlined_call_operand.hbm [shape: bf16[128,128], index: 4, kind: input, shape index: {}]
  %s5 = inlined_call_operand.vmem [shape: f32[1,128], index: 5, kind: input, shape index: {}]
  %s6 = inlined_call_operand.vmem [shape: bf16[1,128], index: 6, kind: input, shape index: {}]
  %s7 = inlined_call_operand.<no memory space> [shape: f32[1,1], index: 7, kind: input, shape index: {}]
  %s8 = inlined_call_operand.vmem [shape: s32[16,1], index: 8, kind: output, shape index: {0}]
  %s9 = inlined_call_operand.hbm [shape: f32[1,8,128], index: 9, kind: output, shape index: {1}]
  %10 = xla_tuple %s8, %s9
  %s11 = sld [smem:[#allocation0]]
  $region58: #{tpu_custom_call.1} parent=0
    _
  %s13 = ssub.s32 1, %s11
  %s14 = scalar_select 0, %s13, %s11
  %v15 = vstv %s7
  %16 = vst [vmem:[#allocation2] sm:$0x1] %v15
  $region1: #{tpu_custom_call.1} parent=0
    #allocation3 [shape = 'u8[65536]{0}', space=vmem, size = 0x10000, scoped, tag = 'input window, operand 3, single buffered']
    #allocation4 [shape = 's32[1]{0}', space=sflag, size = 0x4, scoped, tag = 'scoped memory for tpu_custom_call.1']
    #allocation5 [shape = 's32[1]{0}', space=sflag, size = 0x4, scoped, tag = 'scoped memory for tpu_custom_call.1']
    #allocation6 [shape = 'u8[32768]{0}', space=vmem, size = 0x8000, scoped, tag = 'input window, operand 4, single buffered']
    #allocation7 [shape = 's32[1]{0}', space=sflag, size = 0x4, scoped, tag = 'scoped memory for tpu_custom_call.1']
    #allocation8 [shape = 'u8[4096]{0}', space=vmem, size = 0x1000, scoped, tag = 'output window, operand 1, single buffered']
    %17 = vsyncpa [#allocation4], 0
    %18 = vsyncpa [#allocation7], 0
    %19 = vsyncpa [#allocation5], 0
    // Predicated region
    $region2: #{tpu_custom_call.1} parent=1 // pred_check
      _
    $region3: #{tpu_custom_call.1} parent=1 // pred_check_branch
      %21 = sbr.rel (0) target = $region5
    $region4: #{tpu_custom_call.1} parent=1 // pred_region
      _
    $region5: #{tpu_custom_call.1} parent=1 // pred_fallthru
      _
    // Predicated region
    $region6: #{tpu_custom_call.1} parent=1 // pred_check
      _
    $region7: #{tpu_custom_call.1} parent=1 // pred_check_branch
      %23 = sbr.rel (0) target = $region9
    $region8: #{tpu_custom_call.1} parent=1 // pred_region
      _
    $region9: #{tpu_custom_call.1} parent=1 // pred_fallthru
      _
    // Predicated region
    $region10: #{tpu_custom_call.1} parent=1 // pred_check
      _
    $region11: #{tpu_custom_call.1} parent=1 // pred_check_branch
      %25 = sbr.rel (0) target = $region13
    $region12: #{tpu_custom_call.1} parent=1 // pred_region
      _
    $region13: #{tpu_custom_call.1} parent=1 // pred_fallthru
      _
    // Predicated region
    $region14: #{tpu_custom_call.1} parent=1 // pred_check
      _
    $region15: #{tpu_custom_call.1} parent=1 // pred_check_branch
      %27 = sbr.rel (0) target = $region17
    $region16: #{tpu_custom_call.1} parent=1 // pred_region
      %29 = vsyncadd [#allocation4], 0
      %s30 = sshll.u32 %s3, 4
      %s31 = int_to_ptr.hbm [resolvable:$true] %s30
      %s32 = sshll.u32 [#allocation3], 4
      %s33 = int_to_ptr.vmem [resolvable:$true] %s32
      %38 = dma.hbm_to_vmem [thread:$0]  %s31, 2048, %s33, [#allocation4], 64, 64, 4
    $region17: #{tpu_custom_call.1} parent=1 // pred_fallthru
      _
    // Predicated region
    $region18: #{tpu_custom_call.1} parent=1 // pred_check
      _
    $region19: #{tpu_custom_call.1} parent=1 // pred_check_branch
      %40 = sbr.rel (0) target = $region21
    $region20: #{tpu_custom_call.1} parent=1 // pred_region
      %42 = vsyncadd [#allocation7], 0
      %s43 = sshll.u32 %s4, 4
      %s44 = int_to_ptr.hbm [resolvable:$true] %s43
      %s45 = sshll.u32 [#allocation6], 4
      %s46 = int_to_ptr.vmem [resolvable:$true] %s45
      %51 = dma.hbm_to_vmem [thread:$0]  %s44, 1024, %s46, [#allocation7], 64, 64, 4
    $region21: #{tpu_custom_call.1} parent=1 // pred_fallthru
      _
    // Predicated region
    $region22: #{tpu_custom_call.1} parent=1 // pred_check
      _
    $region23: #{tpu_custom_call.1} parent=1 // pred_check_branch
      %53 = sbr.rel (0) target = $region25
    $region24: #{tpu_custom_call.1} parent=1 // pred_region
      _
    $region25: #{tpu_custom_call.1} parent=1 // pred_fallthru
      _
    // Predicated region
    $region26: #{tpu_custom_call.1} parent=1 // pred_check
      _
    $region27: #{tpu_custom_call.1} parent=1 // pred_check_branch
      %55 = sbr.rel (0) target = $region29
    $region28: #{tpu_custom_call.1} parent=1 // pred_region
      _
    $region29: #{tpu_custom_call.1} parent=1 // pred_fallthru
      _
    // Predicated region
    $region30: #{tpu_custom_call.1} parent=1 // pred_check
      _
    $region31: #{tpu_custom_call.1} parent=1 // pred_check_branch
      %57 = sbr.rel (0) target = $region33
    $region32: #{tpu_custom_call.1} parent=1 // pred_region
      _
    $region33: #{tpu_custom_call.1} parent=1 // pred_fallthru
      _
    // Predicated region
    $region34: #{tpu_custom_call.1} parent=1 // pred_check
      _
    $region35: #{tpu_custom_call.1} parent=1 // pred_check_branch
      %59 = sbr.rel (0) target = $region37
    $region36: #{tpu_custom_call.1} parent=1 // pred_region
      %61 = dma.done [#allocation4], 2048
    $region37: #{tpu_custom_call.1} parent=1 // pred_fallthru
      _
    // Predicated region
    $region38: #{tpu_custom_call.1} parent=1 // pred_check
      _
    $region39: #{tpu_custom_call.1} parent=1 // pred_check_branch
      %63 = sbr.rel (0) target = $region41
    $region40: #{tpu_custom_call.1} parent=1 // pred_region
      %65 = dma.done [#allocation7], 1024
    $region41: #{tpu_custom_call.1} parent=1 // pred_fallthru
      _
    %v66 = vld [vmem:[%s0] sm:$0xff]
    %v67 = vld [vmem:[%s0 + $0x8] sm:$0xff]
    %v68 = vlaneseq
    %v69 = vand.u32 %v68, 127
    %v70 = vadd.s32 %v69, 128
    %71 = vset.pattern.permute.xlu0 0
    %72 = vperm.xlu0 %71, %v66
    %v73 = vpop.permute.xlu0 %72
    %74 = vset.pattern.permute.xlu0 0
    %75 = vperm.xlu0 %74, %v67
    %v76 = vpop.permute.xlu0 %75
    %vm77 = vcmp.eq.s32.totalorder %v69, %v73
    %vm78 = vcmp.eq.s32.totalorder %v70, %v73
    %vm79 = vcmp.eq.s32.totalorder %v69, %v76
    %vm80 = vcmp.eq.s32.totalorder %v70, %v76
    %v81 = vsel %vm77, 1, 0
    %v82 = vsel %vm78, 1, 0
    %v83 = vsel %vm79, 1, 0
    %v84 = vsel %vm80, 1, 0
    %v85 = vcvt.s32.f32 %v81
    %v86 = vcvt.s32.f32 %v82
    %v87 = vcvt.s32.f32 %v83
    %v88 = vcvt.s32.f32 %v84
    %v89 = vpack.c.bf16 %v87, %v85
    %v90 = vpack.c.bf16 %v88, %v86
    %v91 = vld [vmem:[#allocation3] sm:$0xf]
    %v92 = vld [vmem:[#allocation3 + $0x4] sm:$0xf]
    %v93 = vld [vmem:[#allocation3 + $0x8] sm:$0xf]
    %v94 = vld [vmem:[#allocation3 + $0xc] sm:$0xf]
    %v95 = vld [vmem:[#allocation3 + $0x10] sm:$0xf]
    %v96 = vld [vmem:[#allocation3 + $0x14] sm:$0xf]
    %v97 = vld [vmem:[#allocation3 + $0x18] sm:$0xf]
    %v98 = vld [vmem:[#allocation3 + $0x1c] sm:$0xf]
    %v99 = vld [vmem:[#allocation3 + $0x20] sm:$0xf]
    %v100 = vld [vmem:[#allocation3 + $0x24] sm:$0xf]
    %v101 = vld [vmem:[#allocation3 + $0x28] sm:$0xf]
    %v102 = vld [vmem:[#allocation3 + $0x2c] sm:$0xf]
    %v103 = vld [vmem:[#allocation3 + $0x30] sm:$0xf]
    %v104 = vld [vmem:[#allocation3 + $0x34] sm:$0xf]
    %v105 = vld [vmem:[#allocation3 + $0x38] sm:$0xf]
    %v106 = vld [vmem:[#allocation3 + $0x3c] sm:$0xf]
    %v107 = vld [vmem:[#allocation3 + $0x40] sm:$0xf]
    %v108 = vld [vmem:[#allocation3 + $0x44] sm:$0xf]
    %v109 = vld [vmem:[#allocation3 + $0x48] sm:$0xf]
    %v110 = vld [vmem:[#allocation3 + $0x4c] sm:$0xf]
    %v111 = vld [vmem:[#allocation3 + $0x50] sm:$0xf]
    %v112 = vld [vmem:[#allocation3 + $0x54] sm:$0xf]
    %v113 = vld [vmem:[#allocation3 + $0x58] sm:$0xf]
    %v114 = vld [vmem:[#allocation3 + $0x5c] sm:$0xf]
    %v115 = vld [vmem:[#allocation3 + $0x60] sm:$0xf]
    %v116 = vld [vmem:[#allocation3 + $0x64] sm:$0xf]
    %v117 = vld [vmem:[#allocation3 + $0x68] sm:$0xf]
    %v118 = vld [vmem:[#allocation3 + $0x6c] sm:$0xf]
    %v119 = vld [vmem:[#allocation3 + $0x70] sm:$0xf]
    %v120 = vld [vmem:[#allocation3 + $0x74] sm:$0xf]
    %v121 = vld [vmem:[#allocation3 + $0x78] sm:$0xf]
    %v122 = vld [vmem:[#allocation3 + $0x7c] sm:$0xf]
    %v155 = vunpack.c.l.b16 %v91
    %v156 = vunpack.c.l.b16 %v92
    %v157 = vunpack.c.l.b16 %v93
    %v158 = vunpack.c.l.b16 %v94
    %v159 = vunpack.c.l.b16 %v95
    %v160 = vunpack.c.l.b16 %v96
    %v161 = vunpack.c.l.b16 %v97
    %v162 = vunpack.c.l.b16 %v98
    %v163 = vunpack.c.l.b16 %v99
    %v164 = vunpack.c.l.b16 %v100
    %v165 = vunpack.c.l.b16 %v101
    %v166 = vunpack.c.l.b16 %v102
    %v167 = vunpack.c.l.b16 %v103
    %v168 = vunpack.c.l.b16 %v104
    %v169 = vunpack.c.l.b16 %v105
    %v170 = vunpack.c.l.b16 %v106
    %v171 = vunpack.c.l.b16 %v107
    %v172 = vunpack.c.l.b16 %v108
    %v173 = vunpack.c.l.b16 %v109
    %v174 = vunpack.c.l.b16 %v110
    %v175 = vunpack.c.l.b16 %v111
    %v176 = vunpack.c.l.b16 %v112
    %v177 = vunpack.c.l.b16 %v113
    %v178 = vunpack.c.l.b16 %v114
    %v179 = vunpack.c.l.b16 %v115
    %v180 = vunpack.c.l.b16 %v116
    %v181 = vunpack.c.l.b16 %v117
    %v182 = vunpack.c.l.b16 %v118
    %v183 = vunpack.c.l.b16 %v119
    %v184 = vunpack.c.l.b16 %v120
    %v185 = vunpack.c.l.b16 %v121
    %v186 = vunpack.c.l.b16 %v122
    %v187 = vpack.c.b16 %v156, %v155
    %v188 = vpack.c.b16 %v158, %v157
    %v189 = vpack.c.b16 %v160, %v159
    %v190 = vpack.c.b16 %v162, %v161
    %v191 = vpack.c.b16 %v164, %v163
    %v192 = vpack.c.b16 %v166, %v165
    %v193 = vpack.c.b16 %v168, %v167
    %v194 = vpack.c.b16 %v170, %v169
    %v195 = vpack.c.b16 %v172, %v171
    %v196 = vpack.c.b16 %v174, %v173
    %v197 = vpack.c.b16 %v176, %v175
    %v198 = vpack.c.b16 %v178, %v177
    %v199 = vpack.c.b16 %v180, %v179
    %v200 = vpack.c.b16 %v182, %v181
    %v201 = vpack.c.b16 %v184, %v183
    %v202 = vpack.c.b16 %v186, %v185
    %219 = vmatpush.bf16.msra.mxu0 %v194
    %220 = vmatpush.bf16.msra.mxu0 %v193
    %221 = vmatpush.bf16.msra.mxu0 %v192
    %222 = vmatpush.bf16.msra.mxu0 %v191
    %223 = vmatpush.bf16.msra.mxu0 %v190
    %224 = vmatpush.bf16.msra.mxu0 %v189
    %225 = vmatpush.bf16.msra.mxu0 %v188
    %226 = vmatpush.bf16.msra.mxu0 %v187
    %227 = vmatmul.bf16.gmra.mxu0 %v89
    %v228 = vpop.f32.mrf.mxu0
    %v229 = vadd.f32 0.0, %v228
    %v230 = vpop.f32.mrf.mxu0
    %v231 = vadd.f32 0.0, %v230
    %232 = vdwg.mxu0
    %233 = vmatpush.bf16.msra.mxu0 %v202
    %234 = vmatpush.bf16.msra.mxu0 %v201
    %235 = vmatpush.bf16.msra.mxu0 %v200
    %236 = vmatpush.bf16.msra.mxu0 %v199
    %237 = vmatpush.bf16.msra.mxu0 %v198
    %238 = vmatpush.bf16.msra.mxu0 %v197
    %239 = vmatpush.bf16.msra.mxu0 %v196
    %240 = vmatpush.bf16.msra.mxu0 %v195
    %241 = vmatmul.bf16.gmra.mxu0 %v90
    %v242 = vpop.f32.mrf.mxu0
    %v243 = vadd.f32 %v229, %v242
    %v244 = vpop.f32.mrf.mxu0
    %v245 = vadd.f32 %v231, %v244
    %246 = vdwg.mxu0
    %v247 = vpack.c.bf16 %v245, %v243
    %v248 = vld [vmem:[#allocation6] sm:$0xf]
    %v249 = vld [vmem:[#allocation6 + $0x4] sm:$0xf]
    %v250 = vld [vmem:[#allocation6 + $0x8] sm:$0xf]
    %v251 = vld [vmem:[#allocation6 + $0xc] sm:$0xf]
    %v252 = vld [vmem:[#allocation6 + $0x10] sm:$0xf]
    %v253 = vld [vmem:[#allocation6 + $0x14] sm:$0xf]
    %v254 = vld [vmem:[#allocation6 + $0x18] sm:$0xf]
    %v255 = vld [vmem:[#allocation6 + $0x1c] sm:$0xf]
    %v256 = vld [vmem:[#allocation6 + $0x20] sm:$0xf]
    %v257 = vld [vmem:[#allocation6 + $0x24] sm:$0xf]
    %v258 = vld [vmem:[#allocation6 + $0x28] sm:$0xf]
    %v259 = vld [vmem:[#allocation6 + $0x2c] sm:$0xf]
    %v260 = vld [vmem:[#allocation6 + $0x30] sm:$0xf]
    %v261 = vld [vmem:[#allocation6 + $0x34] sm:$0xf]
    %v262 = vld [vmem:[#allocation6 + $0x38] sm:$0xf]
    %v263 = vld [vmem:[#allocation6 + $0x3c] sm:$0xf]
    %v264 = vld [vmem:[%s5] sm:$0x1]
    %v266 = vperm.slane %v264, 0
    %v284 = vunpack.c.l.b16 %v248
    %v285 = vunpack.c.l.b16 %v249
    %v286 = vunpack.c.l.b16 %v250
    %v287 = vunpack.c.l.b16 %v251
    %v288 = vunpack.c.l.b16 %v252
    %v289 = vunpack.c.l.b16 %v253
    %v290 = vunpack.c.l.b16 %v254
    %v291 = vunpack.c.l.b16 %v255
    %v292 = vunpack.c.l.b16 %v256
    %v293 = vunpack.c.l.b16 %v257
    %v294 = vunpack.c.l.b16 %v258
    %v295 = vunpack.c.l.b16 %v259
    %v296 = vunpack.c.l.b16 %v260
    %v297 = vunpack.c.l.b16 %v261
    %v298 = vunpack.c.l.b16 %v262
    %v299 = vunpack.c.l.b16 %v263
    %v300 = vpack.c.b16 %v285, %v284
    %v301 = vpack.c.b16 %v287, %v286
    %v302 = vpack.c.b16 %v289, %v288
    %v303 = vpack.c.b16 %v291, %v290
    %v304 = vpack.c.b16 %v293, %v292
    %v305 = vpack.c.b16 %v295, %v294
    %v306 = vpack.c.b16 %v297, %v296
    %v307 = vpack.c.b16 %v299, %v298
    %316 = vmatpush.bf16.msra.mxu0 %v307
    %317 = vmatpush.bf16.msra.mxu0 %v306
    %318 = vmatpush.bf16.msra.mxu0 %v305
    %319 = vmatpush.bf16.msra.mxu0 %v304
    %320 = vmatpush.bf16.msra.mxu0 %v303
    %321 = vmatpush.bf16.msra.mxu0 %v302
    %322 = vmatpush.bf16.msra.mxu0 %v301
    %323 = vmatpush.bf16.msra.mxu0 %v300
    %324 = vmatmul.bf16.gmra.mxu0 %v247
    %v325 = vpop.f32.mrf.mxu0
    %v326 = vadd.f32 %v266, %v325
    %v327 = vpop.f32.mrf.mxu0
    %v328 = vadd.f32 %v266, %v327
    %329 = vdwg.mxu0
    %v330 = vmul.f32 %v326, %v326
    %v331 = vmul.f32 %v328, %v328
    %v332 = vmul.f32 %v326, %v330
    %v333 = vmul.f32 %v328, %v331
    %v334 = vmul.f32 %v332, 0.044715
    %v335 = vmul.f32 %v333, 0.044715
    %v336 = vadd.f32 %v326, %v334
    %v337 = vadd.f32 %v328, %v335
    %v338 = vmul.f32 %v336, 0.7978846
    %v339 = vmul.f32 %v337, 0.7978846
    %v340 = vtanh.pop %v338
    %v341 = vtanh.pop %v339
    %v342 = vadd.f32 %v340, 1.0
    %v343 = vadd.f32 %v341, 1.0
    %v344 = vmul.f32 %v342, 0.5
    %v345 = vmul.f32 %v343, 0.5
    %v346 = vmul.f32 %v326, %v344
    %v347 = vmul.f32 %v328, %v345
    %v348 = vld [vmem:[%s6] sm:$0x1]
    %v349 = vunpack.c.l.bf16 %v348
    %v350 = vperm.slane %v349, 0
    %v351 = vmul.f32 %v346, %v350
    %v352 = vmul.f32 %v347, %v350
    %353 = vadd.xlane.f32.xlu0 %v351
    %v354 = vpop.xlane.xlu0 %353
    %355 = vadd.xlane.f32.xlu0 %v352
    %v356 = vpop.xlane.xlu0 %355
    %v357 = vld [vmem:[#allocation2] sm:$0x1]
    %v359 = vperm.slane %v357, 0
    %v361 = vadd.f32 %v354, %v359
    %v362 = vadd.f32 %v356, %v359
    %v363 = vld [vmem:[%s2] sm:$0xff]
    %v364 = vld [vmem:[%s2 + $0x8] sm:$0xff]
    %vm365 = vcmp.ge.s32.totalorder %v363, 0
    %vm366 = vcmp.ge.s32.totalorder %v364, 0
    %v367 = vsel %vm365, %v363, 0
    %v368 = vsel %vm366, %v364, 0
    %v369 = vcvt.s32.f32 %v367
    %v370 = vcvt.s32.f32 %v368
    %v371 = vmul.f32 %v369, 2.0
    %v372 = vmul.f32 %v370, 2.0
    %v373 = vsub.f32 1.0, %v371
    %v374 = vsub.f32 1.0, %v372
    %v375 = vmul.f32 %v373, %v361
    %v376 = vmul.f32 %v374, %v362
    %v377 = vmax.f32 %v375, 0.0
    %v378 = vmax.f32 %v376, 0.0
    %v379 = vand.u32 2147483647, %v375
    %v380 = vand.u32 2147483647, %v376
    %v381 = vsub.f32 0.0, %v379
    %v382 = vsub.f32 0.0, %v380
    %v383 = vmul.f32 %v381, 1.442695
    %v384 = vpow.pop %v383
    %v385 = vmul.f32 %v382, 1.442695
    %v386 = vpow.pop %v385
    %v387 = vadd.f32 %v384, 1.0
    %v388 = vadd.f32 %v386, 1.0
    %v389 = vlog2.pop %v387
    %v390 = vmul.f32 %v389, 0.6931472
    %v391 = vlog2.pop %v388
    %v392 = vmul.f32 %v391, 0.6931472
    %v393 = vadd.f32 %v377, %v390
    %v394 = vadd.f32 %v378, %v392
    %v395 = vsel %vm365, 1, 0
    %v396 = vsel %vm366, 1, 0
    %v397 = vcvt.s32.f32 %v395
    %v398 = vcvt.s32.f32 %v396
    %v399 = vmul.f32 %v393, %v397
    %v400 = vmul.f32 %v394, %v398
    %vm401 = vcmp.gt.f32.partialorder %v361, 0.0
    %vm402 = vcmp.gt.f32.partialorder %v362, 0.0
    %v403 = vld [vmem:[%s1] sm:$0xff]
    %v404 = vld [vmem:[%s1 + $0x8] sm:$0xff]
    %vm405 = vcmp.eq.s32.totalorder %v403, 1
    %vm406 = vcmp.eq.s32.totalorder %v404, 1
    %vm407 = vmand %vm401, %vm405
    %vm408 = vmand %vm402, %vm406
    %v409 = vsel %vm407, %v66, 0
    %v410 = vsel %vm408, %v67, 0
    %vm411 = vcmask 7168
    %412 = vst.msk [vmem:[%s8] sm:$0xff] %vm411, %v409
    %413 = vst.msk [vmem:[%s8 + $0x8] sm:$0xff] %vm411, %v410
    %v414 = vsel %vm411, %v399, 0.0
    %v415 = vsel %vm411, %v400, 0.0
    %v416 = vadd.f32 %v414, %v415
    %417 = vadd.xlane.f32.xlu0 %v416
    %v418 = vpop.xlane.xlu0 %417
    %v419 = vrot.slane %v418, 4
    %v420 = vadd.f32 %v418, %v419
    %v421 = vrot.slane %v420, 2
    %v422 = vadd.f32 %v420, %v421
    %v423 = vrot.slane %v422, 1
    %v424 = vadd.f32 %v422, %v423
    %s425 = vtos %v424
    %v426 = vsel %vm411, %v397, 0.0
    %v427 = vsel %vm411, %v398, 0.0
    %v428 = vadd.f32 %v426, %v427
    %429 = vadd.xlane.f32.xlu0 %v428
    %v430 = vpop.xlane.xlu0 %429
    %v431 = vrot.slane %v430, 4
    %v432 = vadd.f32 %v430, %v431
    %v433 = vrot.slane %v432, 2
    %v434 = vadd.f32 %v432, %v433
    %v435 = vrot.slane %v434, 1
    %v436 = vadd.f32 %v434, %v435
    %s437 = vtos %v436
    %vm438 = vcmp.eq.s32.totalorder %v69, 0
    %vm439 = vcmp.eq.s32.totalorder %v69, 1
    %v440 = vstv %s437
    %v441 = vsel %vm439, %v440, 0.0
    %v442 = vstv %s425
    %v443 = vsel %vm438, %v442, %v441
    %444 = vst [vmem:[#allocation8] sm:$0xff] %v443
    // Predicated region
    $region42: #{tpu_custom_call.1} parent=1 // pred_check
      _
    $region43: #{tpu_custom_call.1} parent=1 // pred_check_branch
      %446 = sbr.rel (0) target = $region45
    $region44: #{tpu_custom_call.1} parent=1 // pred_region
      _
    $region45: #{tpu_custom_call.1} parent=1 // pred_fallthru
      _
    // Predicated region
    $region46: #{tpu_custom_call.1} parent=1 // pred_check
      _
    $region47: #{tpu_custom_call.1} parent=1 // pred_check_branch
      %448 = sbr.rel (0) target = $region49
    $region48: #{tpu_custom_call.1} parent=1 // pred_region
      %450 = vsyncadd [#allocation5], 0
      %s452 = sshll.u32 [#allocation8], 4
      %s453 = int_to_ptr.vmem [resolvable:$true] %s452
      %s454 = sshll.u32 %s9, 4
      %s455 = int_to_ptr.hbm [resolvable:$true] %s454
      %457 = dma.vmem_to_hbm [thread:$0]  %s453, 128, %s455, [#allocation5]
    $region49: #{tpu_custom_call.1} parent=1 // pred_fallthru
      _
    // Predicated region
    $region50: #{tpu_custom_call.1} parent=1 // pred_check
      _
    $region51: #{tpu_custom_call.1} parent=1 // pred_check_branch
      %459 = sbr.rel (0) target = $region53
    $region52: #{tpu_custom_call.1} parent=1 // pred_region
      _
    $region53: #{tpu_custom_call.1} parent=1 // pred_fallthru
      _
    // Predicated region
    $region54: #{tpu_custom_call.1} parent=1 // pred_check
      _
    $region55: #{tpu_custom_call.1} parent=1 // pred_check_branch
      %461 = sbr.rel (0) target = $region57
    $region56: #{tpu_custom_call.1} parent=1 // pred_region
      %463 = dma.done [#allocation5], 128
    $region57: #{tpu_custom_call.1} parent=1 // pred_fallthru
      _
    %464 = vsyncpa [#allocation4], 1
    %465 = vsyncpa [#allocation7], 1
    %466 = vsyncpa [#allocation5], 1

</llo_original>
